<compile_context>
chip_gen: v7x
topology: tpu7x:2x2x1
jax: 0.10.0
libtpu: 0.0.40
codegen_flags: <defaults>
</compile_context>

<pallas_src>
import functools
import math

import jax
import jax.numpy as jnp
import numpy as np
from jax.experimental import pallas as pl
from jax.experimental.pallas import tpu as pltpu


# lane-aligned halo width for the conv pass (one 128-lane block on each side)
_HALO = 128
# receptive half-width of the conv stack: conv k3 d1 + block conv d1 + block conv d2
_RECEPTIVE = 1 + 1 + 2
# the roll-wrap / boundary-mask accounting in _conv_kernel needs the halo to be
# at least twice the receptive field (correct values within _RECEPTIVE of the
# tile edge; wrap contamination confined to the outer _RECEPTIVE halo columns).
assert _HALO >= 2 * _RECEPTIVE, "conv halo smaller than conv receptive field"


# ----------------------------------------------------------------------------
# Pass 1: transposed hop-chunks -> mel spectrogram (F x time, time on lanes)
# ----------------------------------------------------------------------------
def _feat_kernel(ct_ref, ctn_ref, wdft_ref, melfb_ref, mel_ref, en_ref,
                 *, oversample, t_tile, t_valid):
    # ct_ref:    [1, hop, t_tile]   chunk columns of this tile           (bf16)
    # ctn_ref:   [1, hop, 128]      next 128 chunk columns (frame overlap) (bf16)
    # wdft_ref:  [2nf_pad, n_fft]   hann-folded cos|sin DFT (transposed)  (bf16)
    # melfb_ref: [F, 2nf_pad]       mel filterbank stacked twice (transposed, f32)
    j = pl.program_id(1)

    # contiguous chunk columns [j*tT, j*tT + tT + 128)
    full = jnp.concatenate([ct_ref[0], ctn_ref[0]], axis=-1)    # (hop, tT+128)
    # fused frame-major windows: row k*hop+i = sample i of chunk t+k
    X = jnp.concatenate([full[:, k:k + t_tile] for k in range(oversample)],
                        axis=0)                                  # (n_fft, tT)

    spec = jnp.dot(wdft_ref[...], X,
                   preferred_element_type=jnp.float32)           # (2nf_pad, tT)
    mel = jnp.dot(melfb_ref[...], spec * spec,
                  preferred_element_type=jnp.float32)            # (F, tT)

    # frames beyond the true frame count see real chunk data + zero padding:
    # zero them so they neither pollute the energy nor the conv halos.
    col = jax.lax.broadcasted_iota(jnp.int32, (1, t_tile), 1) + j * t_tile
    mel = mel * (col < t_valid).astype(jnp.float32)

    mel_ref[0] = mel                                             # lane-dense store
    # fused partial energy (per time column); wrapper sums the tiny (B, T) array
    en_ref[0] = jnp.sum(mel * mel, axis=0, keepdims=True)        # (1, tT)


# ----------------------------------------------------------------------------
# Pass 2: normalised mel -> Conv1d + ConvBlock, channels x time throughout
# ----------------------------------------------------------------------------
def _conv_kernel(inv_ref, prev_ref, mel_ref, next_ref,
                 w1_ref, b1_ref, wa_ref, ba_ref, wb_ref, bb_ref,
                 wc_ref, bc_ref, prelu_ref, out_ref,
                 *, t_tile, t_valid):
    j = pl.program_id(1)
    t_ext = t_tile + 2 * _HALO
    c_out = w1_ref.shape[0]

    # haloed tile: lane-aligned concat of [prev 128 | tile | next 128]
    y = jnp.concatenate([prev_ref[0], mel_ref[0], next_ref[0]], axis=-1)

    # absolute-frame validity ('same' zero padding at sequence ends); halo
    # columns outside [0, T) are clamped re-reads and MUST be zeroed here.
    col = jax.lax.broadcasted_iota(jnp.int32, (1, t_ext), 1) + (j * t_tile - _HALO)
    valid = jnp.logical_and(col >= 0, col < t_valid).astype(jnp.float32)
    y = y * (valid * inv_ref[0, 0])                    # energy norm + boundary zeros
    valid_c = pl.broadcast_to(valid, (c_out, t_ext))   # hoisted, reused twice

    def shift(v, s):
        # z[:, e] = v[:, e + s]; wrapped lanes land only in the outer halo
        return pltpu.roll(v, shift=(-s) % t_ext, axis=1)

    def conv3(v, w_ref, b_ref, d):
        # fused 3-tap conv: sublane concat (3*Cin, t_ext), ONE matmul (bf16/f32)
        vb = v.astype(jnp.bfloat16)
        v3 = jnp.concatenate([shift(vb, -d), vb, shift(vb, d)], axis=0)
        return jnp.dot(w_ref[...], v3,
                       preferred_element_type=jnp.float32) + b_ref[...]

    def prelu(v, a):
        return jnp.where(v >= 0.0, v, a * v)

    # input conv: Conv1d(n_feat -> C, k=3, 'same')
    h1 = conv3(y, w1_ref, b1_ref, 1) * valid_c

    # --- ConvBlock ---
    # TODO(synk): ConvBlock definition is not included in the reference file;
    # implemented as the open_universe UNIVERSE-style block
    # (PReLU -> conv k3 d1 -> PReLU -> conv k3 d2 -> PReLU -> conv k1 -> +res),
    # returning only the first output as `forward` does (x, *_ = conv_block(x)).
    h = prelu(h1, prelu_ref[0, 0])
    h = conv3(h, wa_ref, ba_ref, 1) * valid_c
    h = prelu(h, prelu_ref[0, 1])
    h = conv3(h, wb_ref, bb_ref, 2)
    h = prelu(h, prelu_ref[0, 2])
    h = jnp.dot(wc_ref[...], h.astype(jnp.bfloat16),
                preferred_element_type=jnp.float32) + bc_ref[...]
    out = h + h1                                              # residual

    # drop the (aligned) halo; lane-dense (C, tT) store, no transpose needed
    out_ref[0] = out[:, _HALO:_HALO + t_tile].astype(out_ref.dtype)


# ----------------------------------------------------------------------------
# Front-end constants / framing (plain numpy / JAX; shared with the reference)
# ----------------------------------------------------------------------------
def _hz_to_mel(f):
    return 2595.0 * np.log10(1.0 + f / 700.0)


def _mel_to_hz(m):
    return 700.0 * (10.0 ** (m / 2595.0) - 1.0)


def _make_mel_fb(n_freqs, n_mels, sample_rate):
    # torchaudio melscale_fbanks, mel_scale="htk", norm=None, f_min=0, f_max=sr/2
    all_freqs = np.linspace(0.0, sample_rate / 2.0, n_freqs)
    m_pts = np.linspace(_hz_to_mel(0.0), _hz_to_mel(sample_rate / 2.0), n_mels + 2)
    f_pts = _mel_to_hz(m_pts)
    f_diff = f_pts[1:] - f_pts[:-1]
    slopes = f_pts[None, :] - all_freqs[:, None]
    down = -slopes[:, :-2] / f_diff[:-1]
    up = slopes[:, 2:] / f_diff[1:]
    return np.maximum(0.0, np.minimum(down, up)).astype(np.float32)


def _build_frontend_consts(n_feat, ds_factor, oversample, sample_rate):
    """Window-folded DFT matrix and doubled mel filterbank (freq axis padded to
    a multiple of 8)."""
    n_fft = oversample * ds_factor
    n_freqs = n_fft // 2 + 1
    nf2 = 2 * n_freqs
    nf2p = ((nf2 + 7) // 8) * 8

    n = np.arange(n_fft)
    f = np.arange(n_freqs)
    win = 0.5 - 0.5 * np.cos(2.0 * np.pi * n / n_fft)            # periodic hann
    ang = 2.0 * np.pi * np.outer(n, f) / n_fft
    wfull = np.zeros((n_fft, nf2p), np.float32)
    wfull[:, :n_freqs] = win[:, None] * np.cos(ang)
    wfull[:, n_freqs:nf2] = win[:, None] * np.sin(ang)

    melfb = _make_mel_fb(n_freqs, n_feat, sample_rate)           # (n_freqs, F)
    melfb2 = np.zeros((nf2p, n_feat), np.float32)
    melfb2[:n_freqs] = melfb
    melfb2[n_freqs:nf2] = melfb
    return wfull, melfb2, n_fft, n_freqs, nf2p


def _frame_waveform(x, ds_factor, oversample):
    """Module padding math; returns hop-sized chunks (B, T+os-1, hop) and T."""
    B, _, L = x.shape
    n_fft = oversample * ds_factor
    hop = ds_factor
    pad_tot = n_fft - ds_factor
    pad_left, pad_right = pad_tot // 2, pad_tot - pad_tot // 2
    r = L % ds_factor
    pad_extra = (ds_factor - r) if r != 0 else 0
    xw = jnp.pad(x[:, 0, :], ((0, 0), (pad_left, pad_extra + pad_right)))
    T = (xw.shape[-1] - n_fft) // hop + 1
    chunks = xw.reshape(B, T + oversample - 1, hop)
    return chunks, T


def _pick_time_tile(T, B):
    # Large tiles (whole T per batch up to 1024 frames); only split when the
    # parallel grid would otherwise have < 2 steps (v7x: 2 TensorCores).
    T128 = ((T + 127) // 128) * 128
    tT = min(T128, 1024)
    nT = -(-T // tT)
    if B * nT < 2 and T128 > 128:
        tT = ((T128 // 2 + 127) // 128) * 128
    return tT


# ----------------------------------------------------------------------------
# Parameters (deterministic synthetic init, PyTorch Conv1d-style bounds)
# ----------------------------------------------------------------------------
def init_params(key, n_feat, c):
    keys = jax.random.split(key, 8)

    def conv_w(k, co, ci, ks):
        bound = 1.0 / math.sqrt(ci * ks)
        return jax.random.uniform(k, (co, ci, ks), jnp.float32, -bound, bound)

    def conv_b(k, co, ci, ks):
        bound = 1.0 / math.sqrt(ci * ks)
        return jax.random.uniform(k, (co,), jnp.float32, -bound, bound)

    def fuse3(w):  # (Cout, Cin, 3) -> (Cout, 3*Cin); tap order [t-d, t, t+d]
        return jnp.transpose(w, (0, 2, 1)).reshape(w.shape[0], 3 * w.shape[1])

    w1 = conv_w(keys[0], c, n_feat, 3); b1 = conv_b(keys[1], c, n_feat, 3)
    wa = conv_w(keys[2], c, c, 3);      ba = conv_b(keys[3], c, c, 3)
    wb = conv_w(keys[4], c, c, 3);      bb = conv_b(keys[5], c, c, 3)
    wc = conv_w(keys[6], c, c, 1);      bc = conv_b(keys[7], c, c, 1)

    return dict(
        # conv weights bf16 (MXU-native), (Cout, 3*Cin); biases f32 (C, 1)
        w1=fuse3(w1).astype(jnp.bfloat16), b1=b1[:, None],
        wa=fuse3(wa).astype(jnp.bfloat16), ba=ba[:, None],
        wb=fuse3(wb).astype(jnp.bfloat16), bb=bb[:, None],
        wc=wc[:, :, 0].astype(jnp.bfloat16), bc=bc[:, None],
        prelu=jnp.full((1, 3), 0.25, jnp.float32),
    )


# ----------------------------------------------------------------------------
# Wrapper: two pallas_calls + a tiny (B, T) energy reduce between them
# ----------------------------------------------------------------------------
def wavlm_adapter_forward(x, params, *, n_feat, output_channels, ds_factor,
                          oversample=2, sample_rate=16000):
    B = x.shape[0]
    C = output_channels
    F = n_feat
    hop = ds_factor

    wfull, melfb2, n_fft, _, nf2p = _build_frontend_consts(
        n_feat, ds_factor, oversample, sample_rate)
    chunks, T = _frame_waveform(x, ds_factor, oversample)
    Tc = chunks.shape[1]

    tT = _pick_time_tile(T, B)
    nT = -(-T // tT)
    T_pad = nT * tT
    rc = tT // 128
    nblk = T_pad // 128

    vmem_cap = 32 * 1024 * 1024

    # transposed, lane-padded chunk matrix (time on lanes), bf16 for the MXU
    ct = jnp.transpose(chunks.astype(jnp.bfloat16), (0, 2, 1))      # (B, hop, Tc)
    ct = jnp.pad(ct, ((0, 0), (0, 0), (0, T_pad + 128 - Tc)))       # (B, hop, T_pad+128)

    wdftT = jnp.asarray(wfull.T, dtype=jnp.bfloat16)                # (nf2p, n_fft)
    melfbT = jnp.asarray(melfb2.T, dtype=jnp.float32)               # (F, nf2p)

    # ---------------- pass 1: chunks -> mel (B, F, T_pad) + energy partials ----
    mel, en = pl.pallas_call(
        functools.partial(_feat_kernel, oversample=oversample,
                          t_tile=tT, t_valid=T),
        out_shape=(jax.ShapeDtypeStruct((B, F, T_pad), jnp.float32),
                   jax.ShapeDtypeStruct((B, 1, T_pad), jnp.float32)),
        grid_spec=pltpu.PrefetchScalarGridSpec(
            num_scalar_prefetch=0,
            grid=(B, nT),
            in_specs=[
                pl.BlockSpec((1, hop, tT), lambda b, j: (b, 0, j)),
                pl.BlockSpec((1, hop, 128), lambda b, j: (b, 0, (j + 1) * rc)),
                pl.BlockSpec((nf2p, n_fft), lambda b, j: (0, 0)),
                pl.BlockSpec((F, nf2p), lambda b, j: (0, 0)),
            ],
            out_specs=[
                pl.BlockSpec((1, F, tT), lambda b, j: (b, 0, j)),
                pl.BlockSpec((1, 1, tT), lambda b, j: (b, 0, j)),
            ],
        ),
        compiler_params=pltpu.CompilerParams(
            dimension_semantics=("parallel", "parallel"),
            vmem_limit_bytes=vmem_cap),
    )(ct, ct, wdftT, melfbT)

    # tiny per-batch reduction of the fused partial energies
    energy = jnp.sum(en, axis=(1, 2))                               # (B,)
    inv_norm = 1.0 / jnp.maximum(jnp.sqrt(energy / T), 1e-5)
    inv_norm = inv_norm.reshape(B, 1).astype(jnp.float32)

    # ---------------- pass 2: conv stack, channels x time ----------------
    out = pl.pallas_call(
        functools.partial(_conv_kernel, t_tile=tT, t_valid=T),
        out_shape=jax.ShapeDtypeStruct((B, C, T_pad), jnp.float32),
        grid_spec=pltpu.PrefetchScalarGridSpec(
            num_scalar_prefetch=0,
            grid=(B, nT),
            in_specs=[
                pl.BlockSpec((1, 1), lambda b, j: (b, 0),
                             memory_space=pltpu.MemorySpace.SMEM),   # 1/norm
                pl.BlockSpec((1, F, _HALO),                          # prev halo
                             lambda b, j: (b, 0, jnp.maximum(j * rc - 1, 0))),
                pl.BlockSpec((1, F, tT), lambda b, j: (b, 0, j)),    # main tile
                pl.BlockSpec((1, F, _HALO),                          # next halo
                             lambda b, j: (b, 0, jnp.minimum((j + 1) * rc, nblk - 1))),
                pl.BlockSpec((C, 3 * F), lambda b, j: (0, 0)),       # conv1 W
                pl.BlockSpec((C, 1), lambda b, j: (0, 0)),
                pl.BlockSpec((C, 3 * C), lambda b, j: (0, 0)),       # block d=1
                pl.BlockSpec((C, 1), lambda b, j: (0, 0)),
                pl.BlockSpec((C, 3 * C), lambda b, j: (0, 0)),       # block d=2
                pl.BlockSpec((C, 1), lambda b, j: (0, 0)),
                pl.BlockSpec((C, C), lambda b, j: (0, 0)),           # 1x1 conv
                pl.BlockSpec((C, 1), lambda b, j: (0, 0)),
                pl.BlockSpec((1, 3), lambda b, j: (0, 0),
                             memory_space=pltpu.MemorySpace.SMEM),   # PReLU
            ],
            out_specs=pl.BlockSpec((1, C, tT), lambda b, j: (b, 0, j)),
        ),
        compiler_params=pltpu.CompilerParams(
            dimension_semantics=("parallel", "parallel"),
            vmem_limit_bytes=vmem_cap),
    )(inv_norm, mel, mel, mel,
      params["w1"], params["b1"], params["wa"], params["ba"],
      params["wb"], params["bb"], params["wc"], params["bc"], params["prelu"])

    return out[:, :, :T] if T_pad != T else out


# ----------------------------------------------------------------------------
# Pure-JAX reference (same math, no Pallas, no tiling) for correctness check
# ----------------------------------------------------------------------------
def wavlm_adapter_reference(x, params, *, n_feat, output_channels, ds_factor,
                            oversample=2, sample_rate=16000):
    wfull, melfb2, _, _, _ = _build_frontend_consts(
        n_feat, ds_factor, oversample, sample_rate)
    chunks, T = _frame_waveform(x, ds_factor, oversample)
    hp = jax.lax.Precision.HIGHEST

    frames = jnp.concatenate(
        [chunks[:, k:k + T, :] for k in range(oversample)], axis=-1)  # (B,T,n_fft)
    spec = jnp.matmul(frames.astype(jnp.bfloat16),
                      jnp.asarray(wfull, dtype=jnp.bfloat16),
                      preferred_element_type=jnp.float32)             # (B,T,2nf)
    mel = jnp.matmul(spec * spec, jnp.asarray(melfb2), precision=hp)  # (B,T,F)

    energy = jnp.sum(mel * mel, axis=(1, 2))
    inv = 1.0 / jnp.maximum(jnp.sqrt(energy / T), 1e-5)
    y = jnp.transpose(mel, (0, 2, 1)) * inv[:, None, None]            # (B,F,T)

    def shift(v, s):   # z[..., t] = v[..., t + s], zero outside [0, T)
        if s > 0:
            return jnp.concatenate([v[..., s:], jnp.zeros_like(v[..., :s])], axis=-1)
        return jnp.concatenate([jnp.zeros_like(v[..., :-s]), v[..., :s]], axis=-1)

    def conv3(v, w, b, d):
        vb = v.astype(jnp.bfloat16)
        v3 = jnp.concatenate([shift(vb, -d), vb, shift(vb, d)], axis=1)
        return jnp.einsum('of,bft->bot', w, v3,
                          preferred_element_type=jnp.float32) + b[None]

    def prelu(v, a):
        return jnp.where(v >= 0.0, v, a * v)

    a = params["prelu"][0]
    h1 = conv3(y, params["w1"], params["b1"], 1)
    h = prelu(h1, a[0])
    h = conv3(h, params["wa"], params["ba"], 1)
    h = prelu(h, a[1])
    h = conv3(h, params["wb"], params["bb"], 2)
    h = prelu(h, a[2])
    h = jnp.einsum('oc,bct->bot', params["wc"], h.astype(jnp.bfloat16),
                   preferred_element_type=jnp.float32) + params["bc"][None]
    return h + h1                                                     # (B, C, T)


# ----------------------------------------------------------------------------
if __name__ == "__main__":
    B = 2
    n_feat, output_channels, ds_factor, oversample = 16, 32, 16, 2

    key = jax.random.PRNGKey(0)
    k_x, k_p, k_x2 = jax.random.split(key, 3)
    params = init_params(k_p, n_feat, output_channels)

    # test 1: L=4096 -> T=256 frames (whole-T tile per batch element)
    L = 4096
    x = jax.random.normal(k_x, (B, 1, L), jnp.float32)
    y = wavlm_adapter_forward(
        x, params, n_feat=n_feat, output_channels=output_channels,
        ds_factor=ds_factor, oversample=oversample)
    y = jax.block_until_ready(y)
    y_ref = wavlm_adapter_reference(
        x, params, n_feat=n_feat, output_channels=output_channels,
        ds_factor=ds_factor, oversample=oversample)
    np.testing.assert_allclose(np.asarray(y), np.asarray(y_ref),
                               rtol=2e-2, atol=2e-2)
    assert y.shape == (B, output_channels, L // ds_factor)

    # test 2: L=3200 -> T=200 (not a multiple of 128) exercises the
    # pad-to-tile + boundary-mask path.
    L2 = 3200
    x2 = jax.random.normal(k_x2, (B, 1, L2), jnp.float32)
    y2 = jax.block_until_ready(wavlm_adapter_forward(
        x2, params, n_feat=n_feat, output_channels=output_channels,
        ds_factor=ds_factor, oversample=oversample))
    y2_ref = wavlm_adapter_reference(
        x2, params, n_feat=n_feat, output_channels=output_channels,
        ds_factor=ds_factor, oversample=oversample)
    np.testing.assert_allclose(np.asarray(y2), np.asarray(y2_ref),
                               rtol=2e-2, atol=2e-2)
    assert y2.shape == (B, output_channels, L2 // ds_factor)

    print("KERNEL_OK")
</pallas_src>

<mosaic_0001>
module attributes {stable_mosaic.version = 11 : i64} {
  func.func @_feat_kernel(%arg0: i32, %arg1: i32, %arg2: memref<1x16x256xbf16, #tpu.memory_space<vmem>>, %arg3: memref<1x16x128xbf16, #tpu.memory_space<vmem>>, %arg4: memref<40x32xbf16, #tpu.memory_space<vmem>>, %arg5: memref<16x40xf32, #tpu.memory_space<vmem>>, %arg6: memref<1x16x256xf32, #tpu.memory_space<vmem>>, %arg7: memref<1x1x256xf32, #tpu.memory_space<vmem>>) attributes {dimension_semantics = [#tpu.dimension_semantics<parallel>, #tpu.dimension_semantics<parallel>], iteration_bounds = array<i64: 2, 1>, scalar_prefetch = 0 : i64, scratch_operands = 0 : i64, tpu.core_type = #tpu.core_type<tc>, window_params = [{transform_indices = @transform_0, window_bounds = array<i64: 1, 16, 256>}, {transform_indices = @transform_1, window_bounds = array<i64: 1, 16, 128>}, {pipeline_mode = #tpu.pipeline_mode<synchronous>, transform_indices = @transform_2, window_bounds = array<i64: 40, 32>}, {pipeline_mode = #tpu.pipeline_mode<synchronous>, transform_indices = @transform_3, window_bounds = array<i64: 16, 40>}, {transform_indices = @transform_4, window_bounds = array<i64: 1, 16, 256>}, {transform_indices = @transform_5, window_bounds = array<i64: 1, 1, 256>}]} {
    %c0 = arith.constant 0 : index
    %c0_0 = arith.constant 0 : index
    %c0_1 = arith.constant 0 : index
    %0 = vector.load %arg2[%c0, %c0_0, %c0_1] : memref<1x16x256xbf16, #tpu.memory_space<vmem>>, vector<1x16x256xbf16>
    %1 = vector.shape_cast %0 : vector<1x16x256xbf16> to vector<16x256xbf16>
    %c0_2 = arith.constant 0 : index
    %c0_3 = arith.constant 0 : index
    %c0_4 = arith.constant 0 : index
    %2 = vector.load %arg3[%c0_2, %c0_3, %c0_4] : memref<1x16x128xbf16, #tpu.memory_space<vmem>>, vector<1x16x128xbf16>
    %3 = vector.shape_cast %2 : vector<1x16x128xbf16> to vector<16x128xbf16>
    %4 = tpu.concatenate %1, %3 in 1 : vector<16x256xbf16>, vector<16x128xbf16> -> vector<16x384xbf16>
    %5 = vector.extract_strided_slice %4 {offsets = [0, 0], sizes = [16, 256], strides = [1, 1]} : vector<16x384xbf16> to vector<16x256xbf16>
    %6 = vector.extract_strided_slice %4 {offsets = [0, 1], sizes = [16, 256], strides = [1, 1]} : vector<16x384xbf16> to vector<16x256xbf16>
    %7 = tpu.concatenate %5, %6 in 0 : vector<16x256xbf16>, vector<16x256xbf16> -> vector<32x256xbf16>
    %c0_5 = arith.constant 0 : index
    %c0_6 = arith.constant 0 : index
    %8 = vector.load %arg4[%c0_5, %c0_6] : memref<40x32xbf16, #tpu.memory_space<vmem>>, vector<40x32xbf16>
    %cst = arith.constant dense<0.000000e+00> : vector<40x256xf32>
    %9 = tpu.matmul %8, %7, %cst {dimension_numbers = #tpu.dot_dimension_numbers<[1], [0], [0], [1], [0, 0, 1, 1], [], []>} : vector<40x32xbf16>, vector<32x256xbf16>, vector<40x256xf32> -> vector<40x256xf32>
    %c0_7 = arith.constant 0 : index
    %c0_8 = arith.constant 0 : index
    %10 = vector.load %arg5[%c0_7, %c0_8] : memref<16x40xf32, #tpu.memory_space<vmem>>, vector<16x40xf32>
    %11 = arith.mulf %9, %9 : vector<40x256xf32>
    %cst_9 = arith.constant dense<0.000000e+00> : vector<16x256xf32>
    %12 = tpu.matmul %10, %11, %cst_9 {dimension_numbers = #tpu.dot_dimension_numbers<[1], [0], [0], [1], [0, 0, 1, 1], [], []>} : vector<16x40xf32>, vector<40x256xf32>, vector<16x256xf32> -> vector<16x256xf32>
    %13 = tpu.iota {dimensions = array<i32: 1>} : vector<1x256xi32>
    %c256_i32 = arith.constant 256 : i32
    %14 = arith.muli %arg1, %c256_i32 : i32
    %15 = vector.broadcast %14 : i32 to vector<1x256xi32>
    %16 = arith.addi %13, %15 : vector<1x256xi32>
    %c256_i32_10 = arith.constant 256 : i32
    %17 = vector.broadcast %c256_i32_10 : i32 to vector<1x256xi32>
    %18 = arith.cmpi slt, %16, %17 : vector<1x256xi32>
    %19 = arith.extui %18 : vector<1x256xi1> to vector<1x256xi32>
    %20 = arith.sitofp %19 : vector<1x256xi32> to vector<1x256xf32>
    %21 = vector.broadcast %20 : vector<1x256xf32> to vector<16x256xf32>
    %22 = arith.mulf %12, %21 : vector<16x256xf32>
    %c0_11 = arith.constant 0 : index
    %c0_12 = arith.constant 0 : index
    %c0_13 = arith.constant 0 : index
    %23 = vector.load %arg6[%c0_11, %c0_12, %c0_13] : memref<1x16x256xf32, #tpu.memory_space<vmem>>, vector<1x16x256xf32>
    %24 = vector.shape_cast %23 : vector<1x16x256xf32> to vector<16x256xf32>
    %25 = vector.shape_cast %22 : vector<16x256xf32> to vector<1x16x256xf32>
    tpu.vector_store %arg6[%c0_11, %c0_12, %c0_13], %25 {strides = array<i32>} : memref<1x16x256xf32, #tpu.memory_space<vmem>>, vector<1x16x256xf32>,
    %26 = arith.mulf %22, %22 : vector<16x256xf32>
    %cst_14 = arith.constant dense<0.000000e+00> : vector<256xf32>
    %27 = vector.multi_reduction <add>, %26, %cst_14 [0] : vector<16x256xf32> to vector<256xf32>
    %28 = vector.shape_cast %27 : vector<256xf32> to vector<1x256xf32>
    %c0_15 = arith.constant 0 : index
    %c0_16 = arith.constant 0 : index
    %c0_17 = arith.constant 0 : index
    %29 = vector.load %arg7[%c0_15, %c0_16, %c0_17] : memref<1x1x256xf32, #tpu.memory_space<vmem>>, vector<1x1x256xf32>
    %30 = vector.shape_cast %29 : vector<1x1x256xf32> to vector<1x256xf32>
    %31 = vector.shape_cast %28 : vector<1x256xf32> to vector<1x1x256xf32>
    tpu.vector_store %arg7[%c0_15, %c0_16, %c0_17], %31 {strides = array<i32>} : memref<1x1x256xf32, #tpu.memory_space<vmem>>, vector<1x1x256xf32>,
    return
  }
  func.func @transform_0(%arg0: i32, %arg1: i32) -> (i32, i32, i32) {
    %c0_i32 = arith.constant 0 : i32
    %c0_i32_0 = arith.constant 0 : i32
    return %arg0, %c0_i32, %arg1 : i32, i32, i32
  }
  func.func @transform_1(%arg0: i32, %arg1: i32) -> (i32, i32, i32) {
    %c1_i32 = arith.constant 1 : i32
    %0 = arith.addi %arg1, %c1_i32 : i32
    %c2_i32 = arith.constant 2 : i32
    %1 = arith.muli %0, %c2_i32 : i32
    %c0_i32 = arith.constant 0 : i32
    %c0_i32_0 = arith.constant 0 : i32
    return %arg0, %c0_i32, %1 : i32, i32, i32
  }
  func.func @transform_2(%arg0: i32, %arg1: i32) -> (i32, i32) {
    %c0_i32 = arith.constant 0 : i32
    %c0_i32_0 = arith.constant 0 : i32
    %c0_i32_1 = arith.constant 0 : i32
    return %c0_i32, %c0_i32_0 : i32, i32
  }
  func.func @transform_3(%arg0: i32, %arg1: i32) -> (i32, i32) {
    %c0_i32 = arith.constant 0 : i32
    %c0_i32_0 = arith.constant 0 : i32
    %c0_i32_1 = arith.constant 0 : i32
    return %c0_i32, %c0_i32_0 : i32, i32
  }
  func.func @transform_4(%arg0: i32, %arg1: i32) -> (i32, i32, i32) {
    %c0_i32 = arith.constant 0 : i32
    %c0_i32_0 = arith.constant 0 : i32
    return %arg0, %c0_i32, %arg1 : i32, i32, i32
  }
  func.func @transform_5(%arg0: i32, %arg1: i32) -> (i32, i32, i32) {
    %c0_i32 = arith.constant 0 : i32
    %c0_i32_0 = arith.constant 0 : i32
    return %arg0, %c0_i32, %arg1 : i32, i32, i32
  }
}

</mosaic_0001>

<llo_original>
// kernel: tpu_custom_call.1
$region0: #{tpu_custom_call.1}
  #allocation0 [shape = 'u32[]', space=smem, size = 0x4, offset = 0x4, fixed_abs, tag = 'smem constant byte address 0x4 - core index']
  #allocation1 [shape = 'u32[144,128]{1,0:T(1,128)}', space=vmem, size = 0x12000, scoped, tag = 'internal scratch']
  %s0 = inlined_call_operand.hbm [shape: bf16[2,16,384], index: 0, kind: input, shape index: {}]
  %s1 = inlined_call_operand.hbm [shape: bf16[2,16,384], index: 1, kind: input, shape index: {}]
  %s2 = inlined_call_operand.vmem [shape: bf16[40,32], index: 2, kind: input, shape index: {}]
  %s3 = inlined_call_operand.vmem [shape: f32[16,40], index: 3, kind: input, shape index: {}]
  %s4 = inlined_call_operand.hbm [shape: f32[2,16,256], index: 4, kind: output, shape index: {0}]
  %s5 = inlined_call_operand.hbm [shape: f32[2,1,256], index: 5, kind: output, shape index: {1}]
  %6 = xla_tuple %s4, %s5
  %s7 = sld [smem:[#allocation0]]
  $region65: #{tpu_custom_call.1} parent=0
    _
  %s9 = ssub.s32 1, %s7
  %s10 = scalar_select 0, %s9, %s7
  $region1: #{tpu_custom_call.1} parent=0
    #allocation2 [shape = 'u8[16384]{0}', space=vmem, size = 0x4000, scoped, tag = 'input window, operand 0']
    #allocation3 [shape = 's32[2]{0}', space=sflag, size = 0x8, scoped, tag = 'scoped memory for tpu_custom_call.1']
    #allocation4 [shape = 's32[2]{0}', space=sflag, size = 0x8, scoped, tag = 'scoped memory for tpu_custom_call.1']
    #allocation5 [shape = 'u8[8192]{0}', space=vmem, size = 0x2000, scoped, tag = 'input window, operand 1']
    #allocation6 [shape = 's32[2]{0}', space=sflag, size = 0x8, scoped, tag = 'scoped memory for tpu_custom_call.1']
    #allocation7 [shape = 'u8[32768]{0}', space=vmem, size = 0x8000, scoped, tag = 'output window, operand 0']
    #allocation8 [shape = 'u8[2048]{0}', space=vmem, size = 0x800, scoped, tag = 'output window, operand 1']
    #allocation9 [shape = 's32[2]{0}', space=sflag, size = 0x8, scoped, tag = 'scoped memory for tpu_custom_call.1']
    %11 = vsyncpa [#allocation3], 0
    %s12 = scalar_lea.sflag [#allocation3], 1
    %13 = vsyncpa %s12, 0
    %14 = vsyncpa [#allocation6], 0
    %s15 = scalar_lea.sflag [#allocation6], 1
    %16 = vsyncpa %s15, 0
    %17 = vsyncpa [#allocation4], 0
    %s18 = scalar_lea.sflag [#allocation4], 1
    %19 = vsyncpa %s18, 0
    %20 = vsyncpa [#allocation9], 0
    %s21 = scalar_lea.sflag [#allocation9], 1
    %22 = vsyncpa %s21, 0
    loop: start=0, step=1, limit=4
    $region2: #{tpu_custom_call.1} parent=1 // loop_pre_header
      _
    $region3: #{tpu_custom_call.1} parent=1 // loop_header
      %s24 = sphi 0, %s28
      %p25 = scmp.ge.s32.totalorder %s24, 4
      %s31 = sphi 0, %s43
      %s32 = sphi 0, %s39
      %s33 = sphi 0, %s31
      %s34 = sphi 0, %s32
      %s35 = sphi 0, %s33
      %s36 = sphi 0, %s34
      %s48 = sphi 0, %s50
      %s51 = sphi 0, %s48
      %s52 = sphi 0, %s51
      %s68 = sphi 0, %s52
      %s80 = sphi 0, %s82
      %s83 = sphi 0, %s80
      %s84 = sphi 0, %s83
      %s100 = sphi 0, %s84
      %s104 = sphi 0, %s104
      %s106 = sphi 0, %s104
      %s107 = sphi 0, %s106
      %s121 = sphi 0, %s107
      %s125 = sphi 0, %s125
      %s127 = sphi 0, %s125
      %s128 = sphi 0, %s127
      %s142 = sphi 0, %s128
      %s150 = sphi 0, %s152
      %s153 = sphi 0, %s150
      %s154 = sphi 0, %s153
      %s170 = sphi 0, %s154
      %s178 = sphi 0, %s180
      %s181 = sphi 0, %s178
      %s182 = sphi 0, %s181
      %s198 = sphi 0, %s182
    $region4: #{tpu_custom_call.1} parent=1 // loop_header_branch
      %27 = sbr.rel (%p25) target = $region8
    $region5: #{tpu_custom_call.1} parent=1 // loop_body
      %s29 = ssub.s32 %s24, 1
      %s30 = ssub.s32 %s24, 2
      %s37 = sadd.s32 1, %s32
      %p38 = scmp.ge.s32.totalorder %s37, 1
      %s39 = scalar_select %p38, 0, %s37
      %s40 = sadd.s32 1, %s31
      %s41 = scalar_select %p38, %s40, %s31
      %p42 = scmp.ge.s32.totalorder %s41, 2
      %s43 = scalar_select %p42, 0, %s41
      %s44 = ssub.s32 %s31, %s43
      %s45 = ssub.s32 %s32, %s39
      %s46 = sor.u32 %s44, %s45
      %p47 = scmp.eq.s32.totalorder %s46, 0
      %s49 = sadd.s32 %s48, 1
      %s50 = scalar_select %p47, %s48, %s49
      %p53 = pneg %p47
      %p54 = scmp.eq.s32.totalorder %s24, 1
      %p55 = por %p53, %p54
      %p56 = scmp.ne.s32.totalorder %s48, %s51
      %p57 = scmp.eq.s32.totalorder %s24, 0
      %p58 = por %p56, %p57
      %p59 = scmp.ne.s32.totalorder %s48, %s51
      %p60 = scmp.eq.s32.totalorder %s29, 1
      %p61 = por %p59, %p60
      %p62 = scmp.ne.s32.totalorder %s51, %s52
      %p63 = scmp.eq.s32.totalorder %s29, 0
      %p64 = por %p62, %p63
      %p65 = scmp.ne.s32.totalorder %s51, %s52
      %p66 = scmp.eq.s32.totalorder %s30, 1
      %p67 = por %p65, %p66
      %p69 = scmp.ne.s32.totalorder %s52, %s68
      %p70 = scmp.eq.s32.totalorder %s30, 0
      %p71 = por %p69, %p70
      %s72 = sadd.s32 %s32, 1
      %s73 = smul.u32 %s72, 2
      %s74 = sadd.s32 %s39, 1
      %s75 = smul.u32 %s74, 2
      %s76 = ssub.s32 %s31, %s43
      %s77 = ssub.s32 %s73, %s75
      %s78 = sor.u32 %s76, %s77
      %p79 = scmp.eq.s32.totalorder %s78, 0
      %s81 = sadd.s32 %s80, 1
      %s82 = scalar_select %p79, %s80, %s81
      %p85 = pneg %p79
      %p86 = scmp.eq.s32.totalorder %s24, 1
      %p87 = por %p85, %p86
      %p88 = scmp.ne.s32.totalorder %s80, %s83
      %p89 = scmp.eq.s32.totalorder %s24, 0
      %p90 = por %p88, %p89
      %p91 = scmp.ne.s32.totalorder %s80, %s83
      %p92 = scmp.eq.s32.totalorder %s29, 1
      %p93 = por %p91, %p92
      %p94 = scmp.ne.s32.totalorder %s83, %s84
      %p95 = scmp.eq.s32.totalorder %s29, 0
      %p96 = por %p94, %p95
      %p97 = scmp.ne.s32.totalorder %s83, %s84
      %p98 = scmp.eq.s32.totalorder %s30, 1
      %p99 = por %p97, %p98
      %p101 = scmp.ne.s32.totalorder %s84, %s100
      %p102 = scmp.eq.s32.totalorder %s30, 0
      %p103 = por %p101, %p102
      %s105 = sadd.s32 %s104, 1
      %p108 = scmp.eq.s32.totalorder %s24, 1
      %p109 = scmp.ne.s32.totalorder %s104, %s106
      %p110 = scmp.eq.s32.totalorder %s24, 0
      %p111 = por %p109, %p110
      %p112 = scmp.ne.s32.totalorder %s104, %s106
      %p113 = scmp.eq.s32.totalorder %s29, 1
      %p114 = por %p112, %p113
      %p115 = scmp.ne.s32.totalorder %s106, %s107
      %p116 = scmp.eq.s32.totalorder %s29, 0
      %p117 = por %p115, %p116
      %p118 = scmp.ne.s32.totalorder %s106, %s107
      %p119 = scmp.eq.s32.totalorder %s30, 1
      %p120 = por %p118, %p119
      %p122 = scmp.ne.s32.totalorder %s107, %s121
      %p123 = scmp.eq.s32.totalorder %s30, 0
      %p124 = por %p122, %p123
      %s126 = sadd.s32 %s125, 1
      %p129 = scmp.eq.s32.totalorder %s24, 1
      %p130 = scmp.ne.s32.totalorder %s125, %s127
      %p131 = scmp.eq.s32.totalorder %s24, 0
      %p132 = por %p130, %p131
      %p133 = scmp.ne.s32.totalorder %s125, %s127
      %p134 = scmp.eq.s32.totalorder %s29, 1
      %p135 = por %p133, %p134
      %p136 = scmp.ne.s32.totalorder %s127, %s128
      %p137 = scmp.eq.s32.totalorder %s29, 0
      %p138 = por %p136, %p137
      %p139 = scmp.ne.s32.totalorder %s127, %s128
      %p140 = scmp.eq.s32.totalorder %s30, 1
      %p141 = por %p139, %p140
      %p143 = scmp.ne.s32.totalorder %s128, %s142
      %p144 = scmp.eq.s32.totalorder %s30, 0
      %p145 = por %p143, %p144
      %s146 = ssub.s32 %s31, %s43
      %s147 = ssub.s32 %s32, %s39
      %s148 = sor.u32 %s146, %s147
      %p149 = scmp.eq.s32.totalorder %s148, 0
      %s151 = sadd.s32 %s150, 1
      %s152 = scalar_select %p149, %s150, %s151
      %p155 = pneg %p149
      %p156 = scmp.eq.s32.totalorder %s24, 1
      %p157 = por %p155, %p156
      %p158 = scmp.ne.s32.totalorder %s150, %s153
      %p159 = scmp.eq.s32.totalorder %s24, 0
      %p160 = por %p158, %p159
      %p161 = scmp.ne.s32.totalorder %s150, %s153
      %p162 = scmp.eq.s32.totalorder %s29, 1
      %p163 = por %p161, %p162
      %p164 = scmp.ne.s32.totalorder %s153, %s154
      %p165 = scmp.eq.s32.totalorder %s29, 0
      %p166 = por %p164, %p165
      %p167 = scmp.ne.s32.totalorder %s153, %s154
      %p168 = scmp.eq.s32.totalorder %s30, 1
      %p169 = por %p167, %p168
      %p171 = scmp.ne.s32.totalorder %s154, %s170
      %p172 = scmp.eq.s32.totalorder %s30, 0
      %p173 = por %p171, %p172
      %s174 = ssub.s32 %s31, %s43
      %s175 = ssub.s32 %s32, %s39
      %s176 = sor.u32 %s174, %s175
      %p177 = scmp.eq.s32.totalorder %s176, 0
      %s179 = sadd.s32 %s178, 1
      %s180 = scalar_select %p177, %s178, %s179
      %p183 = pneg %p177
      %p184 = scmp.eq.s32.totalorder %s24, 1
      %p185 = por %p183, %p184
      %p186 = scmp.ne.s32.totalorder %s178, %s181
      %p187 = scmp.eq.s32.totalorder %s24, 0
      %p188 = por %p186, %p187
      %p189 = scmp.ne.s32.totalorder %s178, %s181
      %p190 = scmp.eq.s32.totalorder %s29, 1
      %p191 = por %p189, %p190
      %p192 = scmp.ne.s32.totalorder %s181, %s182
      %p193 = scmp.eq.s32.totalorder %s29, 0
      %p194 = por %p192, %p193
      %p195 = scmp.ne.s32.totalorder %s181, %s182
      %p196 = scmp.eq.s32.totalorder %s30, 1
      %p197 = por %p195, %p196
      %p199 = scmp.ne.s32.totalorder %s182, %s198
      %p200 = scmp.eq.s32.totalorder %s30, 0
      %p201 = por %p199, %p200
      %p202 = scmp.le.s32.totalorder 1, %s24
      %p203 = scmp.lt.s32.totalorder %s24, 3
      %p204 = pnand %p202, %p203
      %p205 = pneg %p204
      // Predicated region
      $region9: #{tpu_custom_call.1} parent=5 // pred_check
        _
      $region10: #{tpu_custom_call.1} parent=5 // pred_check_branch
        %207 = sbr.rel (%p204) target = $region12
      $region11: #{tpu_custom_call.1} parent=5 // pred_region
        %s208 = ssub.s32 %s24, 1
        // Predicated region
        $region13: #{tpu_custom_call.1} parent=11 // pred_check
          %p209 = pneg %p117
        $region14: #{tpu_custom_call.1} parent=11 // pred_check_branch
          %211 = sbr.rel (%p209) target = $region16
        $region15: #{tpu_custom_call.1} parent=11 // pred_region
          _
        $region16: #{tpu_custom_call.1} parent=11 // pred_fallthru
          _
        // Predicated region
        $region17: #{tpu_custom_call.1} parent=11 // pred_check
          %p212 = pneg %p138
        $region18: #{tpu_custom_call.1} parent=11 // pred_check_branch
          %214 = sbr.rel (%p212) target = $region20
        $region19: #{tpu_custom_call.1} parent=11 // pred_region
          _
        $region20: #{tpu_custom_call.1} parent=11 // pred_fallthru
          _
      $region12: #{tpu_custom_call.1} parent=5 // pred_fallthru
        _
      %p215 = scmp.lt.s32.totalorder %s24, 2
      // Predicated region
      $region21: #{tpu_custom_call.1} parent=5 // pred_check
        %p216 = pneg %p215
      $region22: #{tpu_custom_call.1} parent=5 // pred_check_branch
        %218 = sbr.rel (%p216) target = $region24
      $region23: #{tpu_custom_call.1} parent=5 // pred_region
        // Predicated region
        $region25: #{tpu_custom_call.1} parent=23 // pred_check
          %p219 = pneg %p58
        $region26: #{tpu_custom_call.1} parent=23 // pred_check_branch
          %221 = sbr.rel (%p219) target = $region28
        $region27: #{tpu_custom_call.1} parent=23 // pred_region
          %s222 = sand.u32 %s48, 1
          %s223 = scalar_lea.sflag [#allocation3], %s222
          %s224 = sand.u32 %s48, 1
          %s225 = smul.addr %s224, 16
          %s226 = scalar_lea.vmem [#allocation2], %s225
          %s227 = smul.u32 2, %s32
          %s228 = ssub.s32 3, %s227
          %p229 = scmp.lt.s32.totalorder %s228, 2
          %s230 = scalar_select %p229, %s228, 2
          %s231 = smul.u32 128, %s230
          %s233 = ssub.s32 256, %s231
          %234 = vsyncadd %s223, %s233
          %p235 = scmp.ne.s32.totalorder 0, %s231
          %s236 = smul.addr %s31, 6
          %s237 = sadd.s32 %s227, %s236
          %s238 = smul.addr %s237, 64
          %s239 = scalar_lea.hbm %s0, %s238
          %s240 = smul.u32 %s230, 4
          %s241 = smul.u32 %s240, 2
          %s242 = sshll.u32 %s226, 4
          %s243 = int_to_ptr.vmem [resolvable:$true] %s242
          %s244 = sshll.u32 %s241, 4
          %248 = dma.hbm_to_vmem [thread:$0]  (%p235), %s239, %s244, %s243, %s223, 192, 128, %s240
        $region28: #{tpu_custom_call.1} parent=23 // pred_fallthru
          _
        // Predicated region
        $region29: #{tpu_custom_call.1} parent=23 // pred_check
          %p249 = pneg %p90
        $region30: #{tpu_custom_call.1} parent=23 // pred_check_branch
          %251 = sbr.rel (%p249) target = $region32
        $region31: #{tpu_custom_call.1} parent=23 // pred_region
          %s252 = sand.u32 %s80, 1
          %s253 = scalar_lea.sflag [#allocation6], %s252
          %s254 = sand.u32 %s80, 1
          %s255 = smul.addr %s254, 8
          %s256 = scalar_lea.vmem [#allocation5], %s255
          %s257 = sadd.s32 %s32, 1
          %s258 = smul.u32 %s257, 2
          %s260 = ssub.s32 128, 128
          %261 = vsyncadd %s253, %s260
          %s262 = smul.addr %s31, 6
          %s263 = sadd.s32 %s258, %s262
          %s264 = smul.addr %s263, 64
          %s265 = scalar_lea.hbm %s1, %s264
          %s266 = sshll.u32 %s256, 4
          %s267 = int_to_ptr.vmem [resolvable:$true] %s266
          %272 = dma.hbm_to_vmem [thread:$0]  %s265, 128, %s267, %s253, 192, 64, 4
        $region32: #{tpu_custom_call.1} parent=23 // pred_fallthru
          _
      $region24: #{tpu_custom_call.1} parent=5 // pred_fallthru
        _
      %p273 = scmp.le.s32.totalorder 1, %s24
      %p274 = scmp.lt.s32.totalorder %s24, 3
      %p275 = pnand %p273, %p274
      %p276 = pneg %p275
      // Predicated region
      $region33: #{tpu_custom_call.1} parent=5 // pred_check
        _
      $region34: #{tpu_custom_call.1} parent=5 // pred_check_branch
        %278 = sbr.rel (%p275) target = $region36
      $region35: #{tpu_custom_call.1} parent=5 // pred_region
        %s279 = ssub.s32 %s24, 1
        %s280 = sand.u32 %s51, 1
        %s281 = scalar_lea.sflag [#allocation3], %s280
        %s282 = sand.u32 %s51, 1
        %s283 = smul.addr %s282, 16
        %s284 = scalar_lea.vmem [#allocation2], %s283
        // Predicated region
        $region37: #{tpu_custom_call.1} parent=35 // pred_check
          %p285 = pneg %p64
        $region38: #{tpu_custom_call.1} parent=35 // pred_check_branch
          %287 = sbr.rel (%p285) target = $region40
        $region39: #{tpu_custom_call.1} parent=35 // pred_region
          %288 = dma.done %s281, 256
        $region40: #{tpu_custom_call.1} parent=35 // pred_fallthru
          _
        %s289 = sand.u32 %s83, 1
        %s290 = scalar_lea.sflag [#allocation6], %s289
        %s291 = sand.u32 %s83, 1
        %s292 = smul.addr %s291, 8
        %s293 = scalar_lea.vmem [#allocation5], %s292
        // Predicated region
        $region41: #{tpu_custom_call.1} parent=35 // pred_check
          %p294 = pneg %p96
        $region42: #{tpu_custom_call.1} parent=35 // pred_check_branch
          %296 = sbr.rel (%p294) target = $region44
        $region43: #{tpu_custom_call.1} parent=35 // pred_region
          %297 = dma.done %s290, 128
        $region44: #{tpu_custom_call.1} parent=35 // pred_fallthru
          _
        %s298 = sand.u32 %s51, 1
        %s299 = scalar_lea.sflag [#allocation3], %s298
        %s300 = sand.u32 %s51, 1
        %s301 = smul.addr %s300, 16
        %s302 = scalar_lea.vmem [#allocation2], %s301
        %p303 = pneg %p64
        %p304 = pneg %p61
        %s305 = sand.u32 %s83, 1
        %s306 = scalar_lea.sflag [#allocation6], %s305
        %s307 = sand.u32 %s83, 1
        %s308 = smul.addr %s307, 8
        %s309 = scalar_lea.vmem [#allocation5], %s308
        %p310 = pneg %p96
        %p311 = pneg %p93
        %p312 = pneg %p117
        %p313 = pneg %p114
        %p314 = pneg %p138
        %p315 = pneg %p135
        %p316 = pneg %p166
        %p317 = pneg %p163
        %s318 = sand.u32 %s153, 1
        %s319 = scalar_lea.sflag [#allocation4], %s318
        %s320 = sand.u32 %s153, 1
        %s321 = smul.addr %s320, 32
        %s322 = scalar_lea.vmem [#allocation7], %s321
        %p323 = pneg %p194
        %p324 = pneg %p191
        %s325 = sand.u32 %s181, 1
        %s326 = scalar_lea.sflag [#allocation9], %s325
        %s327 = sand.u32 %s181, 1
        %s328 = smul.addr %s327, 2
        %s329 = scalar_lea.vmem [#allocation8], %s328
        %s330 = smul.u32 2, %s34
        %s331 = ssub.s32 3, %s330
        %p332 = scmp.lt.s32.totalorder %s331, 2
        %s333 = scalar_select %p332, %s331, 2
        %s334 = smul.u32 128, %s333
        %s335 = sadd.s32 %s34, 1
        %s336 = smul.u32 %s335, 2
        %s337 = smul.u32 2, %s34
        %s338 = smul.u32 2, %s34
        %v340 = vld [vmem:[%s284] sm:$0xff]
        %v341 = vld [vmem:[%s284 + $0x8] sm:$0xff]
        %v342 = vld [vmem:[%s293] sm:$0xf]
        %v343 = vld [vmem:[%s293 + $0x4] sm:$0xf]
        %v346 = vunpack.c.l.b16 %v340
        %v347 = vunpack.c.h.b16 %v340
        %v348 = vunpack.c.l.b16 %v341
        %v349 = vunpack.c.h.b16 %v341
        %v350 = vpack.c.b16 %v348, %v346
        %v351 = vpack.c.b16 %v349, %v347
        %v356 = vunpack.c.l.b16 %v342
        %v357 = vunpack.c.l.b16 %v343
        %v358 = vpack.c.b16 %v357, %v356
        %359 = vrot.lane.b32.xlu0 %v350, 127
        %v360 = vpop.permute.xlu0 %359
        %361 = vrot.lane.b32.xlu0 %v351, 127
        %v362 = vpop.permute.xlu0 %361
        %363 = vrot.lane.b32.xlu0 %v358, 127
        %v364 = vpop.permute.xlu0 %363
        %vm365 = vcmask 1039360
        %v366 = vsel %vm365, %v360, %v362
        %v367 = vsel %vm365, %v362, %v364
        %v370 = vld [vmem:[%s2] sm:$0xf]
        %v371 = vld [vmem:[%s2 + $0x4] sm:$0xf]
        %v372 = vld [vmem:[%s2 + $0x8] sm:$0xf]
        %v373 = vld [vmem:[%s2 + $0xc] sm:$0xf]
        %v374 = vld [vmem:[%s2 + $0x10] sm:$0xf]
        %v380 = vunpack.c.l.b16 %v370
        %v381 = vunpack.c.l.b16 %v371
        %v382 = vunpack.c.l.b16 %v372
        %v383 = vunpack.c.l.b16 %v373
        %v384 = vunpack.c.l.b16 %v374
        %v385 = vpack.c.b16 %v381, %v380
        %v386 = vpack.c.b16 %v383, %v382
        %v387 = vpack.c.b16 %v384, %v384
        %vm388 = vcmask 261120
        %v390 = vsel %vm388, %v385, 0
        %v393 = vsel %vm388, %v386, 0
        %v396 = vsel %vm388, %v387, 0
        %398 = vmatprep.subr.bf16.mxu0 %v351
        %399 = vmatpush1.bf16.msra.mxu0 %v350
        %400 = vmatprep.subr.bf16.mxu0 %v367
        %401 = vmatpush1.bf16.msra.mxu0 %v366
        %402 = vmatprep.subr.bf16.mxu0 0
        %403 = vmatpush1.bf16.msra.mxu0 0
        %404 = vmatprep.subr.bf16.mxu0 0
        %405 = vmatpush1.bf16.msra.mxu0 0
        %406 = vmatprep.subr.bf16.mxu0 0
        %407 = vmatpush1.bf16.msra.mxu0 0
        %408 = vmatprep.subr.bf16.mxu0 0
        %409 = vmatpush1.bf16.msra.mxu0 0
        %410 = vmatprep.subr.bf16.mxu0 0
        %411 = vmatpush1.bf16.msra.mxu0 0
        %412 = vmatprep.subr.bf16.mxu0 0
        %413 = vmatpush1.bf16.msra.mxu0 0
        %414 = vmatprep.subr.bf16.mxu0 0
        %415 = vmatpush1.bf16.msra.mxu0 0
        %416 = vmatprep.subr.bf16.mxu0 0
        %417 = vmatpush1.bf16.msra.mxu0 0
        %418 = vmatprep.subr.bf16.mxu0 0
        %419 = vmatpush1.bf16.msra.mxu0 0
        %420 = vmatprep.subr.bf16.mxu0 0
        %421 = vmatpush1.bf16.msra.mxu0 0
        %422 = vmatprep.subr.bf16.mxu0 0
        %423 = vmatpush1.bf16.msra.mxu0 0
        %424 = vmatprep.subr.bf16.mxu0 0
        %425 = vmatpush1.bf16.msra.mxu0 0
        %426 = vmatprep.subr.bf16.mxu0 0
        %427 = vmatpush1.bf16.msra.mxu0 0
        %428 = vmatprep.subr.bf16.mxu0 0
        %429 = vmatpush1.bf16.msra.mxu0 0
        %430 = vmatprep.mubr.bf16.mxu0 0
        %431 = vmatmul.mubr.bf16.gmra.mrb[0].mxu0 %v390
        %v432 = vpop.f32.mrb[0].mxu0
        %v433 = vadd.f32 0.0, %v432
        %v434 = vpop.f32.mrb[0].mxu0
        %v435 = vadd.f32 0.0, %v434
        %v436 = vpop.f32.mrb[0].mxu0
        %v437 = vadd.f32 0.0, %v436
        %v438 = vpop.f32.mrb[0].mxu0
        %v439 = vadd.f32 0.0, %v438
        %440 = vmatprep.mubr.bf16.mxu0 0
        %441 = vmatmul.mubr.bf16.gmra.mrb[0].mxu0 %v393
        %v442 = vpop.f32.mrb[0].mxu0
        %v443 = vadd.f32 0.0, %v442
        %v444 = vpop.f32.mrb[0].mxu0
        %v445 = vadd.f32 0.0, %v444
        %v446 = vpop.f32.mrb[0].mxu0
        %v447 = vadd.f32 0.0, %v446
        %v448 = vpop.f32.mrb[0].mxu0
        %v449 = vadd.f32 0.0, %v448
        %450 = vmatprep.mubr.bf16.mxu0 0
        %451 = vmatmul.mubr.bf16.gmra.mrb[0].mxu0 %v396
        %v452 = vpop.f32.mrb[0].mxu0
        %v453 = vadd.f32 0.0, %v452
        %v454 = vpop.f32.mrb[0].mxu0
        %v455 = vadd.f32 0.0, %v454
        %v456 = vpop.f32.mrb[0].mxu0
        %v457 = vpop.f32.mrb[0].mxu0
        %458 = vdwg.mxu0
        %v459 = vld [vmem:[%s3] sm:$0xff]
        %v460 = vld [vmem:[%s3 + $0x8] sm:$0xff]
        %v461 = vmul.f32 %v433, %v433
        %v462 = vmul.f32 %v435, %v435
        %v463 = vmul.f32 %v437, %v437
        %v464 = vmul.f32 %v439, %v439
        %v465 = vmul.f32 %v443, %v443
        %v466 = vmul.f32 %v445, %v445
        %v467 = vmul.f32 %v447, %v447
        %v468 = vmul.f32 %v449, %v449
        %v469 = vmul.f32 %v453, %v453
        %v470 = vmul.f32 %v455, %v455
        %vm471 = vcmask 326656
        %v473 = vsel %vm471, %v459, 0
        %v476 = vsel %vm471, %v460, 0
        %478 = vmatprep.subr.mxu0 %v462
        %479 = vmatpush1.msra.mxu0 %v461
        %480 = vmatprep.subr.mxu0 %v464
        %481 = vmatpush1.msra.mxu0 %v463
        %482 = vmatprep.subr.mxu0 %v466
        %483 = vmatpush1.msra.mxu0 %v465
        %484 = vmatprep.subr.mxu0 %v468
        %485 = vmatpush1.msra.mxu0 %v467
        %486 = vmatprep.subr.mxu0 %v470
        %487 = vmatpush1.msra.mxu0 %v469
        %488 = vmatprep.subr.mxu0 0.0
        %489 = vmatpush1.msra.mxu0 0.0
        %490 = vmatprep.subr.mxu0 0.0
        %491 = vmatpush1.msra.mxu0 0.0
        %492 = vmatprep.subr.mxu0 0.0
        %493 = vmatpush1.msra.mxu0 0.0
        %494 = vmatprep.subr.mxu0 0.0
        %495 = vmatpush1.msra.mxu0 0.0
        %496 = vmatprep.subr.mxu0 0.0
        %497 = vmatpush1.msra.mxu0 0.0
        %498 = vmatprep.subr.mxu0 0.0
        %499 = vmatpush1.msra.mxu0 0.0
        %500 = vmatprep.subr.mxu0 0.0
        %501 = vmatpush1.msra.mxu0 0.0
        %502 = vmatprep.subr.mxu0 0.0
        %503 = vmatpush1.msra.mxu0 0.0
        %504 = vmatprep.subr.mxu0 0.0
        %505 = vmatpush1.msra.mxu0 0.0
        %506 = vmatprep.subr.mxu0 0.0
        %507 = vmatpush1.msra.mxu0 0.0
        %508 = vmatprep.subr.mxu0 0.0
        %509 = vmatpush1.msra.mxu0 0.0
        %510 = vmatprep.subr.mxu0 0.0
        %511 = vmatpush1.msra.mxu0 0.0
        %512 = vmatprep.subr.mxu0 0.0
        %513 = vmatpush1.msra.mxu0 0.0
        %514 = vmatprep.subr.mxu0 0.0
        %515 = vmatpush1.msra.mxu0 0.0
        %516 = vmatprep.subr.mxu0 0.0
        %517 = vmatpush1.msra.mxu0 0.0
        %518 = vmatprep.subr.mxu0 0.0
        %519 = vmatpush1.msra.mxu0 0.0
        %520 = vmatprep.subr.mxu0 0.0
        %521 = vmatpush1.msra.mxu0 0.0
        %522 = vmatprep.subr.mxu0 0.0
        %523 = vmatpush1.msra.mxu0 0.0
        %524 = vmatprep.subr.mxu0 0.0
        %525 = vmatpush1.msra.mxu0 0.0
        %526 = vmatprep.subr.mxu0 0.0
        %527 = vmatpush1.msra.mxu0 0.0
        %528 = vmatprep.subr.mxu0 0.0
        %529 = vmatpush1.msra.mxu0 0.0
        %530 = vmatprep.subr.mxu0 0.0
        %531 = vmatpush1.msra.mxu0 0.0
        %532 = vmatprep.subr.mxu0 0.0
        %533 = vmatpush1.msra.mxu0 0.0
        %534 = vmatprep.subr.mxu0 0.0
        %535 = vmatpush1.msra.mxu0 0.0
        %536 = vmatprep.subr.mxu0 0.0
        %537 = vmatpush1.msra.mxu0 0.0
        %538 = vmatprep.subr.mxu0 0.0
        %539 = vmatpush1.msra.mxu0 0.0
        %540 = vmatprep.subr.mxu0 0.0
        %541 = vmatpush1.msra.mxu0 0.0
        %542 = vmatprep.mubr.f32.mxu0 0.0
        %543 = vmatmul.mubr.f32.gmra.mrb[0].mxu0 %v473
        %v544 = vpop.f32.mrb[0].mxu0
        %v545 = vadd.f32 0.0, %v544
        %v546 = vpop.f32.mrb[0].mxu0
        %v547 = vadd.f32 0.0, %v546
        %548 = vmatprep.mubr.f32.mxu0 0.0
        %549 = vmatmul.mubr.f32.gmra.mrb[0].mxu0 %v476
        %v550 = vpop.f32.mrb[0].mxu0
        %v551 = vadd.f32 0.0, %v550
        %v552 = vpop.f32.mrb[0].mxu0
        %v553 = vadd.f32 0.0, %v552
        %554 = vdwg.mxu0
        %v555 = vlaneseq
        %v556 = vand.u32 %v555, 127
        %v557 = vadd.s32 %v556, 128
        %s558 = smul.u32 %s34, 256
        %v559 = vstv %s558
        %v560 = vadd.s32 %v556, %v559
        %v561 = vadd.s32 %v557, %v559
        %vm562 = vcmp.lt.s32.totalorder %v560, 256
        %vm563 = vcmp.lt.s32.totalorder %v561, 256
        %v564 = vsel %vm562, 1, 0
        %v565 = vsel %vm563, 1, 0
        %v566 = vcvt.s32.f32 %v564
        %v567 = vcvt.s32.f32 %v565
        %v568 = vmul.f32 %v545, %v566
        %v569 = vmul.f32 %v547, %v567
        %v570 = vmul.f32 %v551, %v566
        %v571 = vmul.f32 %v553, %v567
        %572 = vst [vmem:[%s322] sm:$0xff] %v568
        %573 = vst [vmem:[%s322 + $0x8] sm:$0xff] %v569
        %574 = vst [vmem:[%s322 + $0x10] sm:$0xff] %v570
        %575 = vst [vmem:[%s322 + $0x18] sm:$0xff] %v571
        %v576 = vmul.f32 %v568, %v568
        %v577 = vmul.f32 %v569, %v569
        %v578 = vmul.f32 %v570, %v570
        %v579 = vmul.f32 %v571, %v571
        %v580 = vadd.f32 %v576, %v578
        %v581 = vrot.slane %v580, 4
        %v582 = vadd.f32 %v580, %v581
        %v583 = vrot.slane %v582, 2
        %v584 = vadd.f32 %v582, %v583
        %v585 = vrot.slane %v584, 1
        %v586 = vadd.f32 %v584, %v585
        %v587 = vadd.f32 %v577, %v579
        %v588 = vrot.slane %v587, 4
        %v589 = vadd.f32 %v587, %v588
        %v590 = vrot.slane %v589, 2
        %v591 = vadd.f32 %v589, %v590
        %v592 = vrot.slane %v591, 1
        %v593 = vadd.f32 %v591, %v592
        %v596 = vcombine.low %v586, %v593
        %v598 = vunpack.c.l.s4 1966171168
        %v599 = vunpack.c.0.s8 %v598
        %v600 = vlaneseq
        %v601 = vshrl.u32 %v600, 7
        %v602 = vsub.s32 %v599, %v601
        %v603 = vrot.slane %v596, %v602
        %v605 = vunpack.c.l.s4 1966171168
        %v606 = vunpack.c.0.s8 %v605
        %v607 = vlaneseq
        %v608 = vshrl.u32 %v607, 7
        %v609 = vsub.s32 %v606, %v608
        %v610 = vrot.slane %v603, %v609
        %v612 = vlaneseq
        %vm613 = vcmp.ge.s32.totalorder %v612, 0
        %vm614 = vcmp.lt.s32.totalorder %v612, 256
        %vm615 = vmand %vm613, %vm614
        %616 = vst.msk [vmem:[%s329] sm:$0x3] %vm615, %v610
        %s617 = sand.u32 %s153, 1
        %s618 = scalar_lea.sflag [#allocation4], %s617
        %s619 = sand.u32 %s153, 1
        %s620 = smul.addr %s619, 32
        %s621 = scalar_lea.vmem [#allocation7], %s620
        %s622 = sand.u32 %s181, 1
        %s623 = scalar_lea.sflag [#allocation9], %s622
        %s624 = sand.u32 %s181, 1
        %s625 = smul.addr %s624, 2
        %s626 = scalar_lea.vmem [#allocation8], %s625
        // Predicated region
        $region45: #{tpu_custom_call.1} parent=35 // pred_check
          %p627 = pneg %p163
        $region46: #{tpu_custom_call.1} parent=35 // pred_check_branch
          %629 = sbr.rel (%p627) target = $region48
        $region47: #{tpu_custom_call.1} parent=35 // pred_region
          %s630 = smul.u32 2, %s34
          %s632 = ssub.s32 512, 512
          %633 = vsyncadd %s618, %s632
          %s634 = smul.addr %s33, 4
          %s635 = sadd.s32 %s630, %s634
          %s636 = smul.addr %s635, 128
          %s637 = scalar_lea.hbm %s4, %s636
          %s638 = sshll.u32 %s621, 4
          %s639 = int_to_ptr.vmem [resolvable:$true] %s638
          %644 = dma.vmem_to_hbm [thread:$0]  %s639, 512, %s637, %s618, 256, 256, 16
        $region48: #{tpu_custom_call.1} parent=35 // pred_fallthru
          _
        // Predicated region
        $region49: #{tpu_custom_call.1} parent=35 // pred_check
          %p645 = pneg %p191
        $region50: #{tpu_custom_call.1} parent=35 // pred_check_branch
          %647 = sbr.rel (%p645) target = $region52
        $region51: #{tpu_custom_call.1} parent=35 // pred_region
          %s648 = smul.u32 2, %s34
          %s650 = ssub.s32 32, 32
          %651 = vsyncadd %s623, %s650
          %s652 = smul.addr %s33, 2
          %s653 = sadd.s32 %s648, %s652
          %s654 = smul.addr %s653, 16
          %s655 = scalar_lea.hbm %s5, %s654
          %s657 = sshll.u32 %s626, 4
          %s658 = int_to_ptr.vmem [resolvable:$true] %s657
          %660 = dma.vmem_to_hbm [thread:$0]  %s658, 32, %s655, %s623
        $region52: #{tpu_custom_call.1} parent=35 // pred_fallthru
          _
      $region36: #{tpu_custom_call.1} parent=5 // pred_fallthru
        _
      %p661 = scmp.le.s32.totalorder 2, %s24
      // Predicated region
      $region53: #{tpu_custom_call.1} parent=5 // pred_check
        %p662 = pneg %p661
      $region54: #{tpu_custom_call.1} parent=5 // pred_check_branch
        %664 = sbr.rel (%p662) target = $region56
      $region55: #{tpu_custom_call.1} parent=5 // pred_region
        %s665 = ssub.s32 %s24, 2
        // Predicated region
        $region57: #{tpu_custom_call.1} parent=55 // pred_check
          %p666 = pneg %p169
        $region58: #{tpu_custom_call.1} parent=55 // pred_check_branch
          %668 = sbr.rel (%p666) target = $region60
        $region59: #{tpu_custom_call.1} parent=55 // pred_region
          %s669 = sand.u32 %s154, 1
          %s670 = scalar_lea.sflag [#allocation4], %s669
          %s671 = sand.u32 %s154, 1
          %s672 = smul.addr %s671, 32
          %s673 = scalar_lea.vmem [#allocation7], %s672
          %674 = dma.done %s670, 512
        $region60: #{tpu_custom_call.1} parent=55 // pred_fallthru
          _
        // Predicated region
        $region61: #{tpu_custom_call.1} parent=55 // pred_check
          %p675 = pneg %p197
        $region62: #{tpu_custom_call.1} parent=55 // pred_check_branch
          %677 = sbr.rel (%p675) target = $region64
        $region63: #{tpu_custom_call.1} parent=55 // pred_region
          %s678 = sand.u32 %s182, 1
          %s679 = scalar_lea.sflag [#allocation9], %s678
          %s680 = sand.u32 %s182, 1
          %s681 = smul.addr %s680, 2
          %s682 = scalar_lea.vmem [#allocation8], %s681
          %683 = dma.done %s679, 32
        $region64: #{tpu_custom_call.1} parent=55 // pred_fallthru
          _
      $region56: #{tpu_custom_call.1} parent=5 // pred_fallthru
        _
    $region6: #{tpu_custom_call.1} parent=1 // loop_footer
      %s28 = sadd.s32 1, %s24
    $region7: #{tpu_custom_call.1} parent=1 // loop_footer_branch
      %23 = sbr.rel target = $region3
    $region8: #{tpu_custom_call.1} parent=1 // loop_exit
      _
    %684 = vsyncpa [#allocation3], 1
    %s685 = scalar_lea.sflag [#allocation3], 1
    %686 = vsyncpa %s685, 1
    %687 = vsyncpa [#allocation6], 1
    %s688 = scalar_lea.sflag [#allocation6], 1
    %689 = vsyncpa %s688, 1
    %690 = vsyncpa [#allocation4], 1
    %s691 = scalar_lea.sflag [#allocation4], 1
    %692 = vsyncpa %s691, 1
    %693 = vsyncpa [#allocation9], 1
    %s694 = scalar_lea.sflag [#allocation9], 1
    %695 = vsyncpa %s694, 1

</llo_original>
